<compile_context>
chip_gen: v7x
topology: tpu7x:2x2x1
jax: 0.10.0
libtpu: 0.0.40
codegen_flags: <defaults>
</compile_context>

<pallas_src>
import functools

import jax
import jax.numpy as jnp
from jax.experimental import pallas as pl
from jax.experimental.pallas import tpu as pltpu


def _matmul_relu_kernel(x_ref, w_ref, o_ref):
    # x_ref: (tm, K) streamed tile of the input; w_ref: (K, N) resident weight.
    y = jnp.dot(x_ref[...], w_ref[...], preferred_element_type=jnp.float32)
    o_ref[...] = jnp.maximum(y, 0.0).astype(o_ref.dtype)


def _round_up(x, m):
    return ((x + m - 1) // m) * m


@functools.partial(jax.jit, static_argnames=("tm",))
def matmul_relu(x, w, *, tm=2048):
    """relu(x @ w) with a Pallas TPU kernel.

    x: (M, K), w: (K, N).  W is fully resident in VMEM; only M is tiled.
    Non-multiple M is handled by Pallas' masked writeback on the last block
    (no padding, no slicing, no extra HBM passes).
    """
    M, K = x.shape
    K2, N = w.shape
    assert K == K2, (K, K2)

    itemsize = jnp.dtype(x.dtype).itemsize

    # ---- M tile selection ----------------------------------------------
    # Largest tile <= tm, but split into ~4+ grid steps for moderate/large M
    # so v7x's two TensorCores both get steps and the BlockSpec pipeline has
    # something to overlap.  Never shrink below 256 rows just for that
    # (per-grid-step overhead ~0.35 us), and keep a multiple of 8 (sublanes).
    m_aligned = _round_up(max(M, 1), 8)
    quarter = _round_up(pl.cdiv(m_aligned, 4), 8)
    tm_eff = min(tm, m_aligned, max(quarter, 256))
    tm_eff = max(_round_up(tm_eff, 8), 8)

    grid = (pl.cdiv(M, tm_eff),)

    # ---- scoped-VMEM budget (double-buffered x + out tiles, resident W) --
    vmem_need = 2 * tm_eff * (K + N) * itemsize + 2 * K * N * itemsize
    vmem_limit = int(min(max(vmem_need + (4 << 20), 32 << 20), 56 << 20))

    cost = pl.CostEstimate(
        flops=2 * M * K * N,
        transcendentals=0,
        bytes_accessed=(M * K + K * N + M * N) * itemsize,
    )

    return pl.pallas_call(
        _matmul_relu_kernel,
        out_shape=jax.ShapeDtypeStruct((M, N), x.dtype),
        grid_spec=pltpu.PrefetchScalarGridSpec(
            num_scalar_prefetch=0,
            grid=grid,
            in_specs=[
                # Streamed (tm, K) x tile.
                pl.BlockSpec((tm_eff, K), lambda i: (i, 0)),
                # Full (K, N) weight; constant index_map -> block revisit,
                # stays resident in VMEM (no per-step re-DMA).
                pl.BlockSpec((K, N), lambda i: (0, 0)),
            ],
            out_specs=pl.BlockSpec((tm_eff, N), lambda i: (i, 0)),
        ),
        compiler_params=pltpu.CompilerParams(
            dimension_semantics=("parallel",),
            vmem_limit_bytes=vmem_limit,
        ),
        cost_estimate=cost,
    )(x, w)


if __name__ == "__main__":
    key = jax.random.PRNGKey(0)
    kx, kw, kx2, kx3 = jax.random.split(key, 4)

    # Deterministic parameter init (stands in for torch.randn(128, 128)).
    weight = jax.random.normal(kw, (128, 128), dtype=jnp.float32)

    # Small batch of inputs; last dim must be 128 to match the weight.
    x_small = jax.random.normal(kx, (8, 128), dtype=jnp.float32)
    out_small = jax.block_until_ready(matmul_relu(x_small, weight))
    ref_small = jnp.maximum(x_small @ weight, 0.0)
    assert out_small.shape == ref_small.shape
    assert jnp.allclose(out_small, ref_small, atol=1e-4, rtol=1e-4)

    # Moderate M: exercises the >=2-grid-step split (v7x megacore path).
    x_mid = jax.random.normal(kx3, (512, 128), dtype=jnp.float32)
    out_mid = jax.block_until_ready(matmul_relu(x_mid, weight))
    ref_mid = jnp.maximum(x_mid @ weight, 0.0)
    assert out_mid.shape == ref_mid.shape
    assert jnp.allclose(out_mid, ref_mid, atol=1e-4, rtol=1e-4)

    # Non-multiple M: exercises the ragged last block (masked writeback,
    # no padding / slicing in the wrapper).
    x_big = jax.random.normal(kx2, (1000, 128), dtype=jnp.float32)
    out_big = jax.block_until_ready(matmul_relu(x_big, weight))
    ref_big = jnp.maximum(x_big @ weight, 0.0)
    assert out_big.shape == ref_big.shape
    assert jnp.allclose(out_big, ref_big, atol=1e-4, rtol=1e-4)

    print("KERNEL_OK")
</pallas_src>

<mosaic_0001>
module attributes {stable_mosaic.version = 11 : i64} {
  func.func @_matmul_relu_kernel(%arg0: i32, %arg1: memref<8x128xf32, #tpu.memory_space<vmem>>, %arg2: memref<128x128xf32, #tpu.memory_space<vmem>>, %arg3: memref<8x128xf32, #tpu.memory_space<vmem>>) attributes {dimension_semantics = [#tpu.dimension_semantics<parallel>], iteration_bounds = array<i64: 1>, scalar_prefetch = 0 : i64, scratch_operands = 0 : i64, tpu.core_type = #tpu.core_type<tc>, window_params = [{transform_indices = @transform_0, window_bounds = array<i64: 8, 128>}, {pipeline_mode = #tpu.pipeline_mode<synchronous>, transform_indices = @transform_1, window_bounds = array<i64: 128, 128>}, {transform_indices = @transform_2, window_bounds = array<i64: 8, 128>}]} {
    %c0 = arith.constant 0 : index
    %c0_0 = arith.constant 0 : index
    %0 = vector.load %arg1[%c0, %c0_0] : memref<8x128xf32, #tpu.memory_space<vmem>>, vector<8x128xf32>
    %c0_1 = arith.constant 0 : index
    %c0_2 = arith.constant 0 : index
    %1 = vector.load %arg2[%c0_1, %c0_2] : memref<128x128xf32, #tpu.memory_space<vmem>>, vector<128x128xf32>
    %cst = arith.constant dense<0.000000e+00> : vector<8x128xf32>
    %2 = tpu.matmul %0, %1, %cst {dimension_numbers = #tpu.dot_dimension_numbers<[1], [0], [0], [1], [0, 0, 1, 1], [], []>} : vector<8x128xf32>, vector<128x128xf32>, vector<8x128xf32> -> vector<8x128xf32>
    %cst_3 = arith.constant 0.000000e+00 : f32
    %3 = vector.broadcast %cst_3 : f32 to vector<8x128xf32>
    %4 = arith.maximumf %2, %3 : vector<8x128xf32>
    %c0_4 = arith.constant 0 : index
    %c0_5 = arith.constant 0 : index
    %5 = vector.load %arg3[%c0_4, %c0_5] : memref<8x128xf32, #tpu.memory_space<vmem>>, vector<8x128xf32>
    tpu.vector_store %arg3[%c0_4, %c0_5], %4 {strides = array<i32>} : memref<8x128xf32, #tpu.memory_space<vmem>>, vector<8x128xf32>,
    return
  }
  func.func @transform_0(%arg0: i32) -> (i32, i32) {
    %c0_i32 = arith.constant 0 : i32
    %c0_i32_0 = arith.constant 0 : i32
    return %arg0, %c0_i32 : i32, i32
  }
  func.func @transform_1(%arg0: i32) -> (i32, i32) {
    %c0_i32 = arith.constant 0 : i32
    %c0_i32_0 = arith.constant 0 : i32
    %c0_i32_1 = arith.constant 0 : i32
    return %c0_i32, %c0_i32_0 : i32, i32
  }
  func.func @transform_2(%arg0: i32) -> (i32, i32) {
    %c0_i32 = arith.constant 0 : i32
    %c0_i32_0 = arith.constant 0 : i32
    return %arg0, %c0_i32 : i32, i32
  }
}

</mosaic_0001>

<llo_original>
// kernel: matmul_relu.1
$region0: #{matmul_relu.1}
  #allocation0 [shape = 'u32[]', space=smem, size = 0x4, offset = 0x4, fixed_abs, tag = 'smem constant byte address 0x4 - core index']
  #allocation1 [shape = 'u32[144,128]{1,0:T(1,128)}', space=vmem, size = 0x12000, scoped, tag = 'internal scratch']
  %s0 = inlined_call_operand.hbm [shape: f32[8,128], index: 0, kind: input, shape index: {}]
  %s1 = inlined_call_operand.hbm [shape: f32[128,128], index: 1, kind: input, shape index: {}]
  %s2 = inlined_call_operand.hbm [shape: f32[8,128], index: 2, kind: output, shape index: {}]
  %s3 = sld [smem:[#allocation0]]
  $region26: #{matmul_relu.1} parent=0
    _
  %s5 = ssub.s32 1, %s3
  %s6 = scalar_select 0, %s5, %s3
  $region1: #{matmul_relu.1} parent=0
    #allocation2 [shape = 'u8[4096]{0}', space=vmem, size = 0x1000, scoped, tag = 'input window, operand 0, single buffered']
    #allocation3 [shape = 's32[1]{0}', space=sflag, size = 0x4, scoped, tag = 'scoped memory for matmul_relu.1']
    #allocation4 [shape = 's32[1]{0}', space=sflag, size = 0x4, scoped, tag = 'scoped memory for matmul_relu.1']
    #allocation5 [shape = 'u8[65536]{0}', space=vmem, size = 0x10000, scoped, tag = 'input window, operand 1, single buffered']
    #allocation6 [shape = 's32[1]{0}', space=sflag, size = 0x4, scoped, tag = 'scoped memory for matmul_relu.1']
    #allocation7 [shape = 'u8[4096]{0}', space=vmem, size = 0x1000, scoped, tag = 'output window, operand 0, single buffered']
    %7 = vsyncpa [#allocation3], 0
    %8 = vsyncpa [#allocation6], 0
    %9 = vsyncpa [#allocation4], 0
    // Predicated region
    $region2: #{matmul_relu.1} parent=1 // pred_check
      _
    $region3: #{matmul_relu.1} parent=1 // pred_check_branch
      %11 = sbr.rel (0) target = $region5
    $region4: #{matmul_relu.1} parent=1 // pred_region
      %s13 = ssub.s32 128, 128
      %14 = vsyncadd [#allocation3], %s13
      %s16 = sshll.u32 [#allocation2], 4
      %s17 = int_to_ptr.vmem [resolvable:$true] %s16
      %19 = dma.hbm_to_vmem [thread:$0]  %s0, 128, %s17, [#allocation3]
    $region5: #{matmul_relu.1} parent=1 // pred_fallthru
      _
    // Predicated region
    $region6: #{matmul_relu.1} parent=1 // pred_check
      _
    $region7: #{matmul_relu.1} parent=1 // pred_check_branch
      %21 = sbr.rel (0) target = $region9
    $region8: #{matmul_relu.1} parent=1 // pred_region
      %s23 = ssub.s32 2048, 2048
      %24 = vsyncadd [#allocation6], %s23
      %s25 = sshll.u32 [#allocation5], 4
      %s26 = int_to_ptr.vmem [resolvable:$true] %s25
      %31 = dma.hbm_to_vmem [thread:$0]  %s1, 2048, %s26, [#allocation6], 128, 128, 8
    $region9: #{matmul_relu.1} parent=1 // pred_fallthru
      _
    // Predicated region
    $region10: #{matmul_relu.1} parent=1 // pred_check
      _
    $region11: #{matmul_relu.1} parent=1 // pred_check_branch
      %33 = sbr.rel (0) target = $region13
    $region12: #{matmul_relu.1} parent=1 // pred_region
      %34 = dma.done [#allocation3], 128
    $region13: #{matmul_relu.1} parent=1 // pred_fallthru
      _
    // Predicated region
    $region14: #{matmul_relu.1} parent=1 // pred_check
      _
    $region15: #{matmul_relu.1} parent=1 // pred_check_branch
      %36 = sbr.rel (0) target = $region17
    $region16: #{matmul_relu.1} parent=1 // pred_region
      %37 = dma.done [#allocation6], 2048
    $region17: #{matmul_relu.1} parent=1 // pred_fallthru
      _
    %v38 = vld [vmem:[#allocation2] sm:$0xff]
    %v39 = vld [vmem:[#allocation5] sm:$0xff]
    %v40 = vld [vmem:[#allocation5 + $0x8] sm:$0xff]
    %v41 = vld [vmem:[#allocation5 + $0x10] sm:$0xff]
    %v42 = vld [vmem:[#allocation5 + $0x18] sm:$0xff]
    %v43 = vld [vmem:[#allocation5 + $0x20] sm:$0xff]
    %v44 = vld [vmem:[#allocation5 + $0x28] sm:$0xff]
    %v45 = vld [vmem:[#allocation5 + $0x30] sm:$0xff]
    %v46 = vld [vmem:[#allocation5 + $0x38] sm:$0xff]
    %v47 = vld [vmem:[#allocation5 + $0x40] sm:$0xff]
    %v48 = vld [vmem:[#allocation5 + $0x48] sm:$0xff]
    %v49 = vld [vmem:[#allocation5 + $0x50] sm:$0xff]
    %v50 = vld [vmem:[#allocation5 + $0x58] sm:$0xff]
    %v51 = vld [vmem:[#allocation5 + $0x60] sm:$0xff]
    %v52 = vld [vmem:[#allocation5 + $0x68] sm:$0xff]
    %v53 = vld [vmem:[#allocation5 + $0x70] sm:$0xff]
    %v54 = vld [vmem:[#allocation5 + $0x78] sm:$0xff]
    %55 = vmatprep.subr.mxu0 0.0
    %56 = vmatpush1.msra.mxu0 %v39
    %57 = vmatprep.subr.mxu0 0.0
    %58 = vmatpush1.msra.mxu0 %v40
    %59 = vmatprep.subr.mxu0 0.0
    %60 = vmatpush1.msra.mxu0 %v41
    %61 = vmatprep.subr.mxu0 0.0
    %62 = vmatpush1.msra.mxu0 %v42
    %63 = vmatprep.subr.mxu0 0.0
    %64 = vmatpush1.msra.mxu0 %v43
    %65 = vmatprep.subr.mxu0 0.0
    %66 = vmatpush1.msra.mxu0 %v44
    %67 = vmatprep.subr.mxu0 0.0
    %68 = vmatpush1.msra.mxu0 %v45
    %69 = vmatprep.subr.mxu0 0.0
    %70 = vmatpush1.msra.mxu0 %v46
    %71 = vmatprep.subr.mxu0 0.0
    %72 = vmatpush1.msra.mxu0 %v47
    %73 = vmatprep.subr.mxu0 0.0
    %74 = vmatpush1.msra.mxu0 %v48
    %75 = vmatprep.subr.mxu0 0.0
    %76 = vmatpush1.msra.mxu0 %v49
    %77 = vmatprep.subr.mxu0 0.0
    %78 = vmatpush1.msra.mxu0 %v50
    %79 = vmatprep.subr.mxu0 0.0
    %80 = vmatpush1.msra.mxu0 %v51
    %81 = vmatprep.subr.mxu0 0.0
    %82 = vmatpush1.msra.mxu0 %v52
    %83 = vmatprep.subr.mxu0 0.0
    %84 = vmatpush1.msra.mxu0 %v53
    %85 = vmatprep.subr.mxu0 0.0
    %86 = vmatpush1.msra.mxu0 %v54
    %87 = vmatprep.subr.mxu0 0.0
    %88 = vmatpush1.msra.mxu0 0.0
    %89 = vmatprep.subr.mxu0 0.0
    %90 = vmatpush1.msra.mxu0 0.0
    %91 = vmatprep.subr.mxu0 0.0
    %92 = vmatpush1.msra.mxu0 0.0
    %93 = vmatprep.subr.mxu0 0.0
    %94 = vmatpush1.msra.mxu0 0.0
    %95 = vmatprep.subr.mxu0 0.0
    %96 = vmatpush1.msra.mxu0 0.0
    %97 = vmatprep.subr.mxu0 0.0
    %98 = vmatpush1.msra.mxu0 0.0
    %99 = vmatprep.subr.mxu0 0.0
    %100 = vmatpush1.msra.mxu0 0.0
    %101 = vmatprep.subr.mxu0 0.0
    %102 = vmatpush1.msra.mxu0 0.0
    %103 = vmatprep.subr.mxu0 0.0
    %104 = vmatpush1.msra.mxu0 0.0
    %105 = vmatprep.subr.mxu0 0.0
    %106 = vmatpush1.msra.mxu0 0.0
    %107 = vmatprep.subr.mxu0 0.0
    %108 = vmatpush1.msra.mxu0 0.0
    %109 = vmatprep.subr.mxu0 0.0
    %110 = vmatpush1.msra.mxu0 0.0
    %111 = vmatprep.subr.mxu0 0.0
    %112 = vmatpush1.msra.mxu0 0.0
    %113 = vmatprep.subr.mxu0 0.0
    %114 = vmatpush1.msra.mxu0 0.0
    %115 = vmatprep.subr.mxu0 0.0
    %116 = vmatpush1.msra.mxu0 0.0
    %117 = vmatprep.subr.mxu0 0.0
    %118 = vmatpush1.msra.mxu0 0.0
    %119 = vmatprep.mubr.f32.mxu0 0.0
    %120 = vmatmul.mubr.f32.gmra.mrb[0].mxu0 %v38
    %v121 = vpop.f32.mrb[0].mxu0
    %v122 = vadd.f32 0.0, %v121
    %v123 = vpop.f32.mrb[0].mxu0
    %124 = vdwg.mxu0
    %v125 = vmax.f32 %v122, 0.0
    %126 = vst [vmem:[#allocation7] sm:$0xff] %v125
    // Predicated region
    $region18: #{matmul_relu.1} parent=1 // pred_check
      _
    $region19: #{matmul_relu.1} parent=1 // pred_check_branch
      %128 = sbr.rel (0) target = $region21
    $region20: #{matmul_relu.1} parent=1 // pred_region
      %s130 = ssub.s32 128, 128
      %131 = vsyncadd [#allocation4], %s130
      %s133 = sshll.u32 [#allocation7], 4
      %s134 = int_to_ptr.vmem [resolvable:$true] %s133
      %136 = dma.vmem_to_hbm [thread:$0]  %s134, 128, %s2, [#allocation4]
    $region21: #{matmul_relu.1} parent=1 // pred_fallthru
      _
    // Predicated region
    $region22: #{matmul_relu.1} parent=1 // pred_check
      _
    $region23: #{matmul_relu.1} parent=1 // pred_check_branch
      %138 = sbr.rel (0) target = $region25
    $region24: #{matmul_relu.1} parent=1 // pred_region
      %139 = dma.done [#allocation4], 128
    $region25: #{matmul_relu.1} parent=1 // pred_fallthru
      _
    %140 = vsyncpa [#allocation3], 1
    %141 = vsyncpa [#allocation6], 1
    %142 = vsyncpa [#allocation4], 1

</llo_original>
